<compile_context>
chip_gen: v5e
topology: v5e:2x2
jax: 0.10.0
libtpu: 0.0.40
codegen_flags: <defaults>
</compile_context>

<pallas_src>
import jax
import jax.numpy as jnp
from jax import lax
from jax.experimental import pallas as pl
from jax.experimental.pallas import tpu as pltpu

BN_EPS = 1e-5


def _round_up(x, m):
    return ((x + m - 1) // m) * m


# ---------------------------------------------------------------------------
# Kernel 1: conv-as-GEMM + per-channel sum / sum-of-squares across the grid.
# ---------------------------------------------------------------------------
def conv_stats_kernel(p_ref, w_ref, conv_ref, stats_ref):
    i = pl.program_id(0)

    @pl.when(i == 0)
    def _init():
        stats_ref[...] = jnp.zeros_like(stats_ref)

    # One lane-dense MXU GEMM per row tile: (TR, Kp) @ (Kp, Coutp), f32 acc.
    acc = jnp.dot(p_ref[...], w_ref[...], preferred_element_type=jnp.float32)
    conv_ref[...] = acc

    # Single-pass statistics (sum and sum of squares), accumulated in the
    # grid-resident stats output block ('arbitrary' grid axis).
    stats_ref[0:1, :] = stats_ref[0:1, :] + jnp.sum(acc, axis=0, keepdims=True)
    stats_ref[1:2, :] = stats_ref[1:2, :] + jnp.sum(acc * acc, axis=0,
                                                    keepdims=True)


# ---------------------------------------------------------------------------
# Kernel 2: fused BatchNorm affine (precomputed scale/shift) + ReLU.
# ---------------------------------------------------------------------------
def bn_relu_kernel(conv_ref, affine_ref, out_ref):
    scale = affine_ref[0:1, :]   # (1, Coutp)
    shift = affine_ref[1:2, :]   # (1, Coutp)
    y = conv_ref[...] * scale + shift
    out_ref[...] = jnp.maximum(y, 0.0).astype(out_ref.dtype)


def block_forward(x_nchw, w_oihw, bias, gamma, beta, *, padding=1, stride=1,
                  row_tile=256):
    """ReLU(BatchNorm2d(Conv2d(x))) with batch statistics (training-mode BN)."""
    del bias  # Exactly cancelled by the BN batch-mean subtraction.
    N, Cin, H, W = x_nchw.shape
    Cout, _, KH, KW = w_oihw.shape

    Ho = (H + 2 * padding - KH) // stride + 1
    Wo = (W + 2 * padding - KW) // stride + 1

    # NCHW -> NHWC, spatial zero-pad, bf16 activations (f32 accumulation).
    x = jnp.transpose(x_nchw, (0, 2, 3, 1)).astype(jnp.bfloat16)
    x = jnp.pad(x, ((0, 0), (padding, padding), (padding, padding), (0, 0)))

    # im2col in the wrapper so the kernel sees a single contiguous lane-dense
    # GEMM operand (no in-kernel relayout slices).
    cols = []
    for kh in range(KH):
        for kw in range(KW):
            cols.append(x[:, kh:kh + (Ho - 1) * stride + 1:stride,
                           kw:kw + (Wo - 1) * stride + 1:stride, :])
    Kdim = KH * KW * Cin
    patches = jnp.concatenate(cols, axis=-1).reshape(N * Ho * Wo, Kdim)

    Kp = _round_up(Kdim, 128)        # lane-dense contraction dim
    Coutp = _round_up(Cout, 128)     # lane-dense channel dim
    R = N * Ho * Wo
    TR = row_tile                    # multiple of 8, 256+ rows for pipelining
    Rpad = _round_up(max(R, TR), TR)

    patches = jnp.pad(patches, ((0, Rpad - R), (0, Kp - Kdim)))  # bf16, zeros

    # (Cout, Cin, KH, KW) -> (KH*KW*Cin, Cout), flatten order matches im2col.
    w2d = jnp.transpose(w_oihw, (2, 3, 1, 0)).reshape(Kdim, Cout)
    w2d = jnp.pad(w2d, ((0, Kp - Kdim), (0, Coutp - Cout))).astype(jnp.bfloat16)

    grid = (Rpad // TR,)
    vmem_limit = 32 * 1024 * 1024  # fits v7x's 64 MiB VMEM with margin

    conv_out, stats = pl.pallas_call(
        conv_stats_kernel,
        out_shape=(jax.ShapeDtypeStruct((Rpad, Coutp), jnp.float32),
                   jax.ShapeDtypeStruct((8, Coutp), jnp.float32)),
        grid_spec=pltpu.PrefetchScalarGridSpec(
            num_scalar_prefetch=0,
            grid=grid,
            in_specs=[pl.BlockSpec((TR, Kp), lambda i: (i, 0)),
                      pl.BlockSpec((Kp, Coutp), lambda i: (0, 0))],
            out_specs=(pl.BlockSpec((TR, Coutp), lambda i: (i, 0)),
                       pl.BlockSpec((8, Coutp), lambda i: (0, 0)))),
        compiler_params=pltpu.CompilerParams(
            dimension_semantics=("arbitrary",),   # stats carried across grid
            vmem_limit_bytes=vmem_limit),
    )(patches, w2d)

    # Tiny per-channel math in the wrapper: fold BN into one scale/shift.
    cnt = jnp.float32(R)
    ch_sum = stats[0]
    ch_sumsq = stats[1]
    mean = ch_sum / cnt
    var = jnp.maximum(ch_sumsq / cnt - mean * mean, 0.0)   # E[x^2] - mean^2
    inv_std = lax.rsqrt(var + BN_EPS)

    gamma_p = jnp.pad(gamma.astype(jnp.float32), (0, Coutp - Cout))
    beta_p = jnp.pad(beta.astype(jnp.float32), (0, Coutp - Cout))
    scale = gamma_p * inv_std
    shift = beta_p - mean * scale
    affine = jnp.zeros((8, Coutp), jnp.float32).at[0].set(scale).at[1].set(shift)

    out_flat = pl.pallas_call(
        bn_relu_kernel,
        out_shape=jax.ShapeDtypeStruct((Rpad, Coutp), jnp.float32),
        grid_spec=pltpu.PrefetchScalarGridSpec(
            num_scalar_prefetch=0,
            grid=grid,
            in_specs=[pl.BlockSpec((TR, Coutp), lambda i: (i, 0)),
                      pl.BlockSpec((8, Coutp), lambda i: (0, 0))],
            out_specs=pl.BlockSpec((TR, Coutp), lambda i: (i, 0))),
        compiler_params=pltpu.CompilerParams(
            dimension_semantics=("parallel",),    # shards across v7x's 2 TCs
            vmem_limit_bytes=vmem_limit),
    )(conv_out, affine)

    # TODO(synk): the NCHW<->NHWC transposes + im2col remain wrapper-side XLA
    # passes; a halo-aware BlockSpec gather could fold them into the kernel.
    out = out_flat[:R, :Cout].reshape(N, Ho, Wo, Cout)
    return jnp.transpose(out, (0, 3, 1, 2))


if __name__ == "__main__":
    # Small deterministic setup consistent with Block(in_ch=4, out_ch=8).
    N, Cin, H, W = 2, 4, 16, 16
    Cout, K = 8, 3

    key = jax.random.PRNGKey(0)
    kx, kw, kb, kg, kbeta = jax.random.split(key, 5)

    x = jax.random.normal(kx, (N, Cin, H, W), dtype=jnp.float32)
    fan_in = Cin * K * K
    bound = 1.0 / (fan_in ** 0.5)
    w = jax.random.uniform(kw, (Cout, Cin, K, K), jnp.float32, -bound, bound)
    b = jax.random.uniform(kb, (Cout,), jnp.float32, -bound, bound)
    # Non-trivial gamma/beta so the BN affine path is actually exercised.
    gamma = jax.random.uniform(kg, (Cout,), jnp.float32, 0.5, 1.5)
    beta = jax.random.uniform(kbeta, (Cout,), jnp.float32, -0.2, 0.2)

    out = block_forward(x, w, b, gamma, beta, padding=1, stride=1)
    out = jax.block_until_ready(out)
    assert out.shape == (N, Cout, H, W)

    # Reference (same semantics) in plain JAX.
    def reference(xr, wr):
        conv = lax.conv_general_dilated(
            xr, wr, window_strides=(1, 1), padding=((1, 1), (1, 1)),
            dimension_numbers=("NCHW", "OIHW", "NCHW"),
            precision=lax.Precision.HIGHEST)
        conv = conv + b.reshape(1, Cout, 1, 1)
        mean = jnp.mean(conv, axis=(0, 2, 3), keepdims=True)
        var = jnp.mean((conv - mean) ** 2, axis=(0, 2, 3), keepdims=True)
        y = (conv - mean) * lax.rsqrt(var + BN_EPS)
        y = y * gamma.reshape(1, Cout, 1, 1) + beta.reshape(1, Cout, 1, 1)
        return jnp.maximum(y, 0.0)

    # Precision-matched reference (bf16-rounded conv operands, f32 accumulate).
    ref_bf16 = reference(x.astype(jnp.bfloat16).astype(jnp.float32),
                         w.astype(jnp.bfloat16).astype(jnp.float32))
    # Full-f32 reference (exact module semantics), looser tolerance because the
    # kernel feeds the MXU in bf16.
    ref_f32 = reference(x, w)

    assert jnp.allclose(out, ref_bf16, atol=2e-3, rtol=2e-3), \
        float(jnp.max(jnp.abs(out - ref_bf16)))
    assert jnp.allclose(out, ref_f32, atol=5e-2, rtol=5e-2), \
        float(jnp.max(jnp.abs(out - ref_f32)))

    print("KERNEL_OK")
</pallas_src>

<mosaic_0001>
module attributes {stable_mosaic.version = 11 : i64} {
  func.func @conv_stats_kernel(%arg0: i32, %arg1: memref<256x128xbf16, #tpu.memory_space<vmem>>, %arg2: memref<128x128xbf16, #tpu.memory_space<vmem>>, %arg3: memref<256x128xf32, #tpu.memory_space<vmem>>, %arg4: memref<8x128xf32, #tpu.memory_space<vmem>>) attributes {dimension_semantics = [#tpu.dimension_semantics<arbitrary>], iteration_bounds = array<i64: 2>, scalar_prefetch = 0 : i64, scratch_operands = 0 : i64, tpu.core_type = #tpu.core_type<tc>, window_params = [{transform_indices = @transform_0, window_bounds = array<i64: 256, 128>}, {pipeline_mode = #tpu.pipeline_mode<synchronous>, transform_indices = @transform_1, window_bounds = array<i64: 128, 128>}, {transform_indices = @transform_2, window_bounds = array<i64: 256, 128>}, {pipeline_mode = #tpu.pipeline_mode<synchronous>, transform_indices = @transform_3, window_bounds = array<i64: 8, 128>}]} {
    %c0_i32 = arith.constant 0 : i32
    %0 = arith.cmpi eq, %arg0, %c0_i32 : i32
    %1 = arith.extui %0 : i1 to i32
    %c0_i32_0 = arith.constant 0 : i32
    %2 = arith.cmpi ne, %1, %c0_i32_0 : i32
    scf.if %2 {
      %cst_15 = arith.constant 0.000000e+00 : f32
      %18 = vector.broadcast %cst_15 : f32 to vector<8x128xf32>
      %c0_16 = arith.constant 0 : index
      %c0_17 = arith.constant 0 : index
      %19 = vector.load %arg4[%c0_16, %c0_17] : memref<8x128xf32, #tpu.memory_space<vmem>>, vector<8x128xf32>
      tpu.vector_store %arg4[%c0_16, %c0_17], %18 {strides = array<i32>} : memref<8x128xf32, #tpu.memory_space<vmem>>, vector<8x128xf32>,
    } else {
    }
    %c0 = arith.constant 0 : index
    %c0_1 = arith.constant 0 : index
    %3 = vector.load %arg1[%c0, %c0_1] : memref<256x128xbf16, #tpu.memory_space<vmem>>, vector<256x128xbf16>
    %c0_2 = arith.constant 0 : index
    %c0_3 = arith.constant 0 : index
    %4 = vector.load %arg2[%c0_2, %c0_3] : memref<128x128xbf16, #tpu.memory_space<vmem>>, vector<128x128xbf16>
    %cst = arith.constant dense<0.000000e+00> : vector<256x128xf32>
    %5 = tpu.matmul %3, %4, %cst {dimension_numbers = #tpu.dot_dimension_numbers<[1], [0], [0], [1], [0, 0, 1, 1], [], []>} : vector<256x128xbf16>, vector<128x128xbf16>, vector<256x128xf32> -> vector<256x128xf32>
    %c0_4 = arith.constant 0 : index
    %c0_5 = arith.constant 0 : index
    %6 = vector.load %arg3[%c0_4, %c0_5] : memref<256x128xf32, #tpu.memory_space<vmem>>, vector<256x128xf32>
    tpu.vector_store %arg3[%c0_4, %c0_5], %5 {strides = array<i32>} : memref<256x128xf32, #tpu.memory_space<vmem>>, vector<256x128xf32>,
    %c0_6 = arith.constant 0 : index
    %c0_7 = arith.constant 0 : index
    %7 = vector.load %arg4[%c0_6, %c0_7] : memref<8x128xf32, #tpu.memory_space<vmem>>, vector<1x128xf32>
    %cst_8 = arith.constant dense<0.000000e+00> : vector<128xf32>
    %8 = vector.multi_reduction <add>, %5, %cst_8 [0] : vector<256x128xf32> to vector<128xf32>
    %9 = vector.shape_cast %8 : vector<128xf32> to vector<1x128xf32>
    %10 = arith.addf %7, %9 : vector<1x128xf32>
    %c0_9 = arith.constant 0 : index
    %c0_10 = arith.constant 0 : index
    %11 = vector.load %arg4[%c0_9, %c0_10] : memref<8x128xf32, #tpu.memory_space<vmem>>, vector<1x128xf32>
    tpu.vector_store %arg4[%c0_9, %c0_10], %10 {strides = array<i32>} : memref<8x128xf32, #tpu.memory_space<vmem>>, vector<1x128xf32>,
    %c1 = arith.constant 1 : index
    %c0_11 = arith.constant 0 : index
    %12 = vector.load %arg4[%c1, %c0_11] : memref<8x128xf32, #tpu.memory_space<vmem>>, vector<1x128xf32>
    %13 = arith.mulf %5, %5 : vector<256x128xf32>
    %cst_12 = arith.constant dense<0.000000e+00> : vector<128xf32>
    %14 = vector.multi_reduction <add>, %13, %cst_12 [0] : vector<256x128xf32> to vector<128xf32>
    %15 = vector.shape_cast %14 : vector<128xf32> to vector<1x128xf32>
    %16 = arith.addf %12, %15 : vector<1x128xf32>
    %c1_13 = arith.constant 1 : index
    %c0_14 = arith.constant 0 : index
    %17 = vector.load %arg4[%c1_13, %c0_14] : memref<8x128xf32, #tpu.memory_space<vmem>>, vector<1x128xf32>
    tpu.vector_store %arg4[%c1_13, %c0_14], %16 {strides = array<i32>} : memref<8x128xf32, #tpu.memory_space<vmem>>, vector<1x128xf32>,
    return
  }
  func.func @transform_0(%arg0: i32) -> (i32, i32) {
    %c0_i32 = arith.constant 0 : i32
    %c0_i32_0 = arith.constant 0 : i32
    return %arg0, %c0_i32 : i32, i32
  }
  func.func @transform_1(%arg0: i32) -> (i32, i32) {
    %c0_i32 = arith.constant 0 : i32
    %c0_i32_0 = arith.constant 0 : i32
    %c0_i32_1 = arith.constant 0 : i32
    return %c0_i32, %c0_i32_0 : i32, i32
  }
  func.func @transform_2(%arg0: i32) -> (i32, i32) {
    %c0_i32 = arith.constant 0 : i32
    %c0_i32_0 = arith.constant 0 : i32
    return %arg0, %c0_i32 : i32, i32
  }
  func.func @transform_3(%arg0: i32) -> (i32, i32) {
    %c0_i32 = arith.constant 0 : i32
    %c0_i32_0 = arith.constant 0 : i32
    %c0_i32_1 = arith.constant 0 : i32
    return %c0_i32, %c0_i32_0 : i32, i32
  }
}

</mosaic_0001>

<llo_original>
// kernel: tpu_custom_call.1
$region0: #{tpu_custom_call.1}
  #allocation0 [shape = 'u32[]', space=smem, size = 0x4, offset = 0x4, fixed_abs, tag = 'smem constant byte address 0x4 - core index']
  #allocation1 [shape = 'u32[72,128]{1,0:T(1,128)}', space=vmem, size = 0x9000, scoped, tag = 'internal scratch']
  %s0 = inlined_call_operand.hbm [shape: bf16[512,128], index: 0, kind: input, shape index: {}]
  %s1 = inlined_call_operand.hbm [shape: bf16[128,128], index: 1, kind: input, shape index: {}]
  %s2 = inlined_call_operand.hbm [shape: f32[512,128], index: 2, kind: output, shape index: {0}]
  %s3 = inlined_call_operand.hbm [shape: f32[8,128], index: 3, kind: output, shape index: {1}]
  %4 = xla_tuple %s2, %s3
  %s5 = sld [smem:[#allocation0]]
  $region61: #{tpu_custom_call.1} parent=0
    _
  %s7 = ssub.s32 1, %s5
  %s8 = scalar_select 0, %s7, %s5
  $region1: #{tpu_custom_call.1} parent=0
    #allocation2 [shape = 'u8[131072]{0}', space=vmem, size = 0x20000, scoped, tag = 'input window, operand 0']
    #allocation3 [shape = 's32[2]{0}', space=sflag, size = 0x8, scoped, tag = 'scoped memory for tpu_custom_call.1']
    #allocation4 [shape = 's32[2]{0}', space=sflag, size = 0x8, scoped, tag = 'scoped memory for tpu_custom_call.1']
    #allocation5 [shape = 'u8[32768]{0}', space=vmem, size = 0x8000, scoped, tag = 'input window, operand 1, single buffered']
    #allocation6 [shape = 's32[1]{0}', space=sflag, size = 0x4, scoped, tag = 'scoped memory for tpu_custom_call.1']
    #allocation7 [shape = 'u8[262144]{0}', space=vmem, size = 0x40000, scoped, tag = 'output window, operand 0']
    #allocation8 [shape = 'u8[4096]{0}', space=vmem, size = 0x1000, scoped, tag = 'output window, operand 1, single buffered']
    #allocation9 [shape = 's32[1]{0}', space=sflag, size = 0x4, scoped, tag = 'scoped memory for tpu_custom_call.1']
    %9 = vsyncpa [#allocation3], 0
    %s10 = scalar_lea.sflag [#allocation3], 1
    %11 = vsyncpa %s10, 0
    %12 = vsyncpa [#allocation6], 0
    %13 = vsyncpa [#allocation4], 0
    %s14 = scalar_lea.sflag [#allocation4], 1
    %15 = vsyncpa %s14, 0
    %16 = vsyncpa [#allocation9], 0
    loop: start=0, step=1, limit=4
    $region2: #{tpu_custom_call.1} parent=1 // loop_pre_header
      _
    $region3: #{tpu_custom_call.1} parent=1 // loop_header
      %s18 = sphi 0, %s22
      %p19 = scmp.ge.s32.totalorder %s18, 4
      %s28 = sphi 0, %s30
      %s31 = sphi 0, %s28
      %s32 = sphi 0, %s31
      %s48 = sphi 0, %s32
      %s52 = sphi 0, %s52
      %s54 = sphi 0, %s52
      %s55 = sphi 0, %s54
      %s69 = sphi 0, %s55
      %s75 = sphi 0, %s77
      %s78 = sphi 0, %s75
      %s79 = sphi 0, %s78
      %s95 = sphi 0, %s79
      %s99 = sphi 0, %s99
      %s101 = sphi 0, %s99
      %s102 = sphi 0, %s101
      %s116 = sphi 0, %s102
    $region4: #{tpu_custom_call.1} parent=1 // loop_header_branch
      %21 = sbr.rel (%p19) target = $region8
    $region5: #{tpu_custom_call.1} parent=1 // loop_body
      %s23 = ssub.s32 %s18, 1
      %s24 = ssub.s32 %s18, 2
      %s25 = sadd.s32 %s18, 1
      %s26 = ssub.s32 %s18, %s25
      %p27 = scmp.eq.s32.totalorder %s26, 0
      %s29 = sadd.s32 %s28, 1
      %s30 = scalar_select %p27, %s28, %s29
      %p33 = pneg %p27
      %p34 = scmp.eq.s32.totalorder %s18, 1
      %p35 = por %p33, %p34
      %p36 = scmp.ne.s32.totalorder %s28, %s31
      %p37 = scmp.eq.s32.totalorder %s18, 0
      %p38 = por %p36, %p37
      %p39 = scmp.ne.s32.totalorder %s28, %s31
      %p40 = scmp.eq.s32.totalorder %s23, 1
      %p41 = por %p39, %p40
      %p42 = scmp.ne.s32.totalorder %s31, %s32
      %p43 = scmp.eq.s32.totalorder %s23, 0
      %p44 = por %p42, %p43
      %p45 = scmp.ne.s32.totalorder %s31, %s32
      %p46 = scmp.eq.s32.totalorder %s24, 1
      %p47 = por %p45, %p46
      %p49 = scmp.ne.s32.totalorder %s32, %s48
      %p50 = scmp.eq.s32.totalorder %s24, 0
      %p51 = por %p49, %p50
      %s53 = sadd.s32 %s52, 1
      %p56 = scmp.eq.s32.totalorder %s18, 1
      %p57 = scmp.ne.s32.totalorder %s52, %s54
      %p58 = scmp.eq.s32.totalorder %s18, 0
      %p59 = por %p57, %p58
      %p60 = scmp.ne.s32.totalorder %s52, %s54
      %p61 = scmp.eq.s32.totalorder %s23, 1
      %p62 = por %p60, %p61
      %p63 = scmp.ne.s32.totalorder %s54, %s55
      %p64 = scmp.eq.s32.totalorder %s23, 0
      %p65 = por %p63, %p64
      %p66 = scmp.ne.s32.totalorder %s54, %s55
      %p67 = scmp.eq.s32.totalorder %s24, 1
      %p68 = por %p66, %p67
      %p70 = scmp.ne.s32.totalorder %s55, %s69
      %p71 = scmp.eq.s32.totalorder %s24, 0
      %p72 = por %p70, %p71
      %s73 = ssub.s32 %s18, %s25
      %p74 = scmp.eq.s32.totalorder %s73, 0
      %s76 = sadd.s32 %s75, 1
      %s77 = scalar_select %p74, %s75, %s76
      %p80 = pneg %p74
      %p81 = scmp.eq.s32.totalorder %s18, 1
      %p82 = por %p80, %p81
      %p83 = scmp.ne.s32.totalorder %s75, %s78
      %p84 = scmp.eq.s32.totalorder %s18, 0
      %p85 = por %p83, %p84
      %p86 = scmp.ne.s32.totalorder %s75, %s78
      %p87 = scmp.eq.s32.totalorder %s23, 1
      %p88 = por %p86, %p87
      %p89 = scmp.ne.s32.totalorder %s78, %s79
      %p90 = scmp.eq.s32.totalorder %s23, 0
      %p91 = por %p89, %p90
      %p92 = scmp.ne.s32.totalorder %s78, %s79
      %p93 = scmp.eq.s32.totalorder %s24, 1
      %p94 = por %p92, %p93
      %p96 = scmp.ne.s32.totalorder %s79, %s95
      %p97 = scmp.eq.s32.totalorder %s24, 0
      %p98 = por %p96, %p97
      %s100 = sadd.s32 %s99, 1
      %p103 = scmp.eq.s32.totalorder %s18, 1
      %p104 = scmp.ne.s32.totalorder %s99, %s101
      %p105 = scmp.eq.s32.totalorder %s18, 0
      %p106 = por %p104, %p105
      %p107 = scmp.ne.s32.totalorder %s99, %s101
      %p108 = scmp.eq.s32.totalorder %s23, 1
      %p109 = por %p107, %p108
      %p110 = scmp.ne.s32.totalorder %s101, %s102
      %p111 = scmp.eq.s32.totalorder %s23, 0
      %p112 = por %p110, %p111
      %p113 = scmp.ne.s32.totalorder %s101, %s102
      %p114 = scmp.eq.s32.totalorder %s24, 1
      %p115 = por %p113, %p114
      %p117 = scmp.ne.s32.totalorder %s102, %s116
      %p118 = scmp.eq.s32.totalorder %s24, 0
      %p119 = por %p117, %p118
      %p120 = scmp.le.s32.totalorder 1, %s18
      %p121 = scmp.lt.s32.totalorder %s18, 3
      %p122 = pnand %p120, %p121
      %p123 = pneg %p122
      // Predicated region
      $region9: #{tpu_custom_call.1} parent=5 // pred_check
        _
      $region10: #{tpu_custom_call.1} parent=5 // pred_check_branch
        %125 = sbr.rel (%p122) target = $region12
      $region11: #{tpu_custom_call.1} parent=5 // pred_region
        %s126 = ssub.s32 %s18, 1
        // Predicated region
        $region13: #{tpu_custom_call.1} parent=11 // pred_check
          %p127 = pneg %p65
        $region14: #{tpu_custom_call.1} parent=11 // pred_check_branch
          %129 = sbr.rel (%p127) target = $region16
        $region15: #{tpu_custom_call.1} parent=11 // pred_region
          %131 = vsyncadd [#allocation6], 0
          %s132 = sshll.u32 %s1, 4
          %s133 = int_to_ptr.hbm [resolvable:$true] %s132
          %s134 = sshll.u32 [#allocation5], 4
          %s135 = int_to_ptr.vmem [resolvable:$true] %s134
          %140 = dma.hbm_to_vmem [thread:$0]  %s133, 1024, %s135, [#allocation6], 64, 64, 4
        $region16: #{tpu_custom_call.1} parent=11 // pred_fallthru
          _
      $region12: #{tpu_custom_call.1} parent=5 // pred_fallthru
        _
      %p141 = scmp.lt.s32.totalorder %s18, 2
      // Predicated region
      $region17: #{tpu_custom_call.1} parent=5 // pred_check
        %p142 = pneg %p141
      $region18: #{tpu_custom_call.1} parent=5 // pred_check_branch
        %144 = sbr.rel (%p142) target = $region20
      $region19: #{tpu_custom_call.1} parent=5 // pred_region
        // Predicated region
        $region21: #{tpu_custom_call.1} parent=19 // pred_check
          %p145 = pneg %p38
        $region22: #{tpu_custom_call.1} parent=19 // pred_check_branch
          %147 = sbr.rel (%p145) target = $region24
        $region23: #{tpu_custom_call.1} parent=19 // pred_region
          %s148 = sand.u32 %s28, 1
          %s149 = scalar_lea.sflag [#allocation3], %s148
          %s150 = sand.u32 %s28, 1
          %s151 = smul.addr %s150, 128
          %s152 = scalar_lea.vmem [#allocation2], %s151
          %s153 = smul.u32 32, %s18
          %155 = vsyncadd %s149, 0
          %s156 = smul.addr %s153, 4
          %s157 = scalar_lea.hbm %s0, %s156
          %s158 = sshll.u32 %s157, 4
          %s159 = int_to_ptr.hbm [resolvable:$true] %s158
          %s160 = sshll.u32 %s152, 4
          %s161 = int_to_ptr.vmem [resolvable:$true] %s160
          %166 = dma.hbm_to_vmem [thread:$0]  %s159, 2048, %s161, %s149, 64, 64, 4
        $region24: #{tpu_custom_call.1} parent=19 // pred_fallthru
          _
      $region20: #{tpu_custom_call.1} parent=5 // pred_fallthru
        _
      %p167 = scmp.le.s32.totalorder 1, %s18
      %p168 = scmp.lt.s32.totalorder %s18, 3
      %p169 = pnand %p167, %p168
      %p170 = pneg %p169
      // Predicated region
      $region25: #{tpu_custom_call.1} parent=5 // pred_check
        _
      $region26: #{tpu_custom_call.1} parent=5 // pred_check_branch
        %172 = sbr.rel (%p169) target = $region28
      $region27: #{tpu_custom_call.1} parent=5 // pred_region
        %s173 = ssub.s32 %s18, 1
        %s174 = sand.u32 %s31, 1
        %s175 = scalar_lea.sflag [#allocation3], %s174
        %s176 = sand.u32 %s31, 1
        %s177 = smul.addr %s176, 128
        %s178 = scalar_lea.vmem [#allocation2], %s177
        // Predicated region
        $region29: #{tpu_custom_call.1} parent=27 // pred_check
          %p179 = pneg %p44
        $region30: #{tpu_custom_call.1} parent=27 // pred_check_branch
          %181 = sbr.rel (%p179) target = $region32
        $region31: #{tpu_custom_call.1} parent=27 // pred_region
          %183 = dma.done %s175, 2048
        $region32: #{tpu_custom_call.1} parent=27 // pred_fallthru
          _
        // Predicated region
        $region33: #{tpu_custom_call.1} parent=27 // pred_check
          %p184 = pneg %p65
        $region34: #{tpu_custom_call.1} parent=27 // pred_check_branch
          %186 = sbr.rel (%p184) target = $region36
        $region35: #{tpu_custom_call.1} parent=27 // pred_region
          %188 = dma.done [#allocation6], 1024
        $region36: #{tpu_custom_call.1} parent=27 // pred_fallthru
          _
        %s189 = sand.u32 %s31, 1
        %s190 = scalar_lea.sflag [#allocation3], %s189
        %s191 = sand.u32 %s31, 1
        %s192 = smul.addr %s191, 128
        %s193 = scalar_lea.vmem [#allocation2], %s192
        %p194 = pneg %p44
        %p195 = pneg %p41
        %p196 = pneg %p65
        %p197 = pneg %p62
        %p198 = pneg %p91
        %p199 = pneg %p88
        %s200 = sand.u32 %s78, 1
        %s201 = scalar_lea.sflag [#allocation4], %s200
        %s202 = sand.u32 %s78, 1
        %s203 = smul.addr %s202, 256
        %s204 = scalar_lea.vmem [#allocation7], %s203
        %p205 = pneg %p112
        %p206 = pneg %p109
        %s207 = smul.u32 32, %s23
        %s208 = smul.u32 32, %s23
        %p209 = scmp.eq.s32.totalorder %s23, 0
        // Predicated region
        $region37: #{tpu_custom_call.1} parent=27 // pred_check
          %p210 = pneg %p209
        $region38: #{tpu_custom_call.1} parent=27 // pred_check_branch
          %212 = sbr.rel (%p210) target = $region40
        $region39: #{tpu_custom_call.1} parent=27 // pred_region
          %213 = vst [vmem:[#allocation8] sm:$0xff] 0.0
        $region40: #{tpu_custom_call.1} parent=27 // pred_fallthru
          _
        %v214 = vld [vmem:[%s178] sm:$0xf]
        %v215 = vld [vmem:[%s178 + $0x4] sm:$0xf]
        %v216 = vld [vmem:[%s178 + $0x8] sm:$0xf]
        %v217 = vld [vmem:[%s178 + $0xc] sm:$0xf]
        %v218 = vld [vmem:[%s178 + $0x10] sm:$0xf]
        %v219 = vld [vmem:[%s178 + $0x14] sm:$0xf]
        %v220 = vld [vmem:[%s178 + $0x18] sm:$0xf]
        %v221 = vld [vmem:[%s178 + $0x1c] sm:$0xf]
        %v222 = vld [vmem:[%s178 + $0x20] sm:$0xf]
        %v223 = vld [vmem:[%s178 + $0x24] sm:$0xf]
        %v224 = vld [vmem:[%s178 + $0x28] sm:$0xf]
        %v225 = vld [vmem:[%s178 + $0x2c] sm:$0xf]
        %v226 = vld [vmem:[%s178 + $0x30] sm:$0xf]
        %v227 = vld [vmem:[%s178 + $0x34] sm:$0xf]
        %v228 = vld [vmem:[%s178 + $0x38] sm:$0xf]
        %v229 = vld [vmem:[%s178 + $0x3c] sm:$0xf]
        %v230 = vld [vmem:[%s178 + $0x40] sm:$0xf]
        %v231 = vld [vmem:[%s178 + $0x44] sm:$0xf]
        %v232 = vld [vmem:[%s178 + $0x48] sm:$0xf]
        %v233 = vld [vmem:[%s178 + $0x4c] sm:$0xf]
        %v234 = vld [vmem:[%s178 + $0x50] sm:$0xf]
        %v235 = vld [vmem:[%s178 + $0x54] sm:$0xf]
        %v236 = vld [vmem:[%s178 + $0x58] sm:$0xf]
        %v237 = vld [vmem:[%s178 + $0x5c] sm:$0xf]
        %v238 = vld [vmem:[%s178 + $0x60] sm:$0xf]
        %v239 = vld [vmem:[%s178 + $0x64] sm:$0xf]
        %v240 = vld [vmem:[%s178 + $0x68] sm:$0xf]
        %v241 = vld [vmem:[%s178 + $0x6c] sm:$0xf]
        %v242 = vld [vmem:[%s178 + $0x70] sm:$0xf]
        %v243 = vld [vmem:[%s178 + $0x74] sm:$0xf]
        %v244 = vld [vmem:[%s178 + $0x78] sm:$0xf]
        %v245 = vld [vmem:[%s178 + $0x7c] sm:$0xf]
        %v246 = vld [vmem:[#allocation5] sm:$0xf]
        %v247 = vld [vmem:[#allocation5 + $0x4] sm:$0xf]
        %v248 = vld [vmem:[#allocation5 + $0x8] sm:$0xf]
        %v249 = vld [vmem:[#allocation5 + $0xc] sm:$0xf]
        %v250 = vld [vmem:[#allocation5 + $0x10] sm:$0xf]
        %v251 = vld [vmem:[#allocation5 + $0x14] sm:$0xf]
        %v252 = vld [vmem:[#allocation5 + $0x18] sm:$0xf]
        %v253 = vld [vmem:[#allocation5 + $0x1c] sm:$0xf]
        %v254 = vld [vmem:[#allocation5 + $0x20] sm:$0xf]
        %v255 = vld [vmem:[#allocation5 + $0x24] sm:$0xf]
        %v256 = vld [vmem:[#allocation5 + $0x28] sm:$0xf]
        %v257 = vld [vmem:[#allocation5 + $0x2c] sm:$0xf]
        %v258 = vld [vmem:[#allocation5 + $0x30] sm:$0xf]
        %v259 = vld [vmem:[#allocation5 + $0x34] sm:$0xf]
        %v260 = vld [vmem:[#allocation5 + $0x38] sm:$0xf]
        %v261 = vld [vmem:[#allocation5 + $0x3c] sm:$0xf]
        %v294 = vunpack.c.l.b16 %v214
        %v295 = vunpack.c.l.b16 %v215
        %v296 = vunpack.c.l.b16 %v216
        %v297 = vunpack.c.l.b16 %v217
        %v298 = vunpack.c.l.b16 %v218
        %v299 = vunpack.c.l.b16 %v219
        %v300 = vunpack.c.l.b16 %v220
        %v301 = vunpack.c.l.b16 %v221
        %v302 = vunpack.c.l.b16 %v222
        %v303 = vunpack.c.l.b16 %v223
        %v304 = vunpack.c.l.b16 %v224
        %v305 = vunpack.c.l.b16 %v225
        %v306 = vunpack.c.l.b16 %v226
        %v307 = vunpack.c.l.b16 %v227
        %v308 = vunpack.c.l.b16 %v228
        %v309 = vunpack.c.l.b16 %v229
        %v310 = vunpack.c.l.b16 %v230
        %v311 = vunpack.c.l.b16 %v231
        %v312 = vunpack.c.l.b16 %v232
        %v313 = vunpack.c.l.b16 %v233
        %v314 = vunpack.c.l.b16 %v234
        %v315 = vunpack.c.l.b16 %v235
        %v316 = vunpack.c.l.b16 %v236
        %v317 = vunpack.c.l.b16 %v237
        %v318 = vunpack.c.l.b16 %v238
        %v319 = vunpack.c.l.b16 %v239
        %v320 = vunpack.c.l.b16 %v240
        %v321 = vunpack.c.l.b16 %v241
        %v322 = vunpack.c.l.b16 %v242
        %v323 = vunpack.c.l.b16 %v243
        %v324 = vunpack.c.l.b16 %v244
        %v325 = vunpack.c.l.b16 %v245
        %v326 = vpack.c.b16 %v295, %v294
        %v327 = vpack.c.b16 %v297, %v296
        %v328 = vpack.c.b16 %v299, %v298
        %v329 = vpack.c.b16 %v301, %v300
        %v330 = vpack.c.b16 %v303, %v302
        %v331 = vpack.c.b16 %v305, %v304
        %v332 = vpack.c.b16 %v307, %v306
        %v333 = vpack.c.b16 %v309, %v308
        %v334 = vpack.c.b16 %v311, %v310
        %v335 = vpack.c.b16 %v313, %v312
        %v336 = vpack.c.b16 %v315, %v314
        %v337 = vpack.c.b16 %v317, %v316
        %v338 = vpack.c.b16 %v319, %v318
        %v339 = vpack.c.b16 %v321, %v320
        %v340 = vpack.c.b16 %v323, %v322
        %v341 = vpack.c.b16 %v325, %v324
        %v374 = vunpack.c.l.b16 %v246
        %v375 = vunpack.c.l.b16 %v247
        %v376 = vunpack.c.l.b16 %v248
        %v377 = vunpack.c.l.b16 %v249
        %v378 = vunpack.c.l.b16 %v250
        %v379 = vunpack.c.l.b16 %v251
        %v380 = vunpack.c.l.b16 %v252
        %v381 = vunpack.c.l.b16 %v253
        %v382 = vunpack.c.l.b16 %v254
        %v383 = vunpack.c.l.b16 %v255
        %v384 = vunpack.c.l.b16 %v256
        %v385 = vunpack.c.l.b16 %v257
        %v386 = vunpack.c.l.b16 %v258
        %v387 = vunpack.c.l.b16 %v259
        %v388 = vunpack.c.l.b16 %v260
        %v389 = vunpack.c.l.b16 %v261
        %v390 = vpack.c.b16 %v375, %v374
        %v391 = vpack.c.b16 %v377, %v376
        %v392 = vpack.c.b16 %v379, %v378
        %v393 = vpack.c.b16 %v381, %v380
        %v394 = vpack.c.b16 %v383, %v382
        %v395 = vpack.c.b16 %v385, %v384
        %v396 = vpack.c.b16 %v387, %v386
        %v397 = vpack.c.b16 %v389, %v388
        %406 = vmatpush.bf16.msra.mxu0 %v397
        %407 = vmatpush.bf16.msra.mxu0 %v396
        %408 = vmatpush.bf16.msra.mxu0 %v395
        %409 = vmatpush.bf16.msra.mxu0 %v394
        %410 = vmatpush.bf16.msra.mxu0 %v393
        %411 = vmatpush.bf16.msra.mxu0 %v392
        %412 = vmatpush.bf16.msra.mxu0 %v391
        %413 = vmatpush.bf16.msra.mxu0 %v390
        %414 = vmatmul.bf16.gmra.mxu0 %v326
        %v415 = vpop.f32.mrf.mxu0
        %v416 = vadd.f32 0.0, %v415
        %v417 = vpop.f32.mrf.mxu0
        %v418 = vadd.f32 0.0, %v417
        %419 = vmatmul.bf16.gmra.mxu0 %v327
        %v420 = vpop.f32.mrf.mxu0
        %v421 = vadd.f32 0.0, %v420
        %v422 = vpop.f32.mrf.mxu0
        %v423 = vadd.f32 0.0, %v422
        %424 = vmatmul.bf16.gmra.mxu0 %v328
        %v425 = vpop.f32.mrf.mxu0
        %v426 = vadd.f32 0.0, %v425
        %v427 = vpop.f32.mrf.mxu0
        %v428 = vadd.f32 0.0, %v427
        %429 = vmatmul.bf16.gmra.mxu0 %v329
        %v430 = vpop.f32.mrf.mxu0
        %v431 = vadd.f32 0.0, %v430
        %v432 = vpop.f32.mrf.mxu0
        %v433 = vadd.f32 0.0, %v432
        %434 = vmatmul.bf16.gmra.mxu0 %v330
        %v435 = vpop.f32.mrf.mxu0
        %v436 = vadd.f32 0.0, %v435
        %v437 = vpop.f32.mrf.mxu0
        %v438 = vadd.f32 0.0, %v437
        %439 = vmatmul.bf16.gmra.mxu0 %v331
        %v440 = vpop.f32.mrf.mxu0
        %v441 = vadd.f32 0.0, %v440
        %v442 = vpop.f32.mrf.mxu0
        %v443 = vadd.f32 0.0, %v442
        %444 = vmatmul.bf16.gmra.mxu0 %v332
        %v445 = vpop.f32.mrf.mxu0
        %v446 = vadd.f32 0.0, %v445
        %v447 = vpop.f32.mrf.mxu0
        %v448 = vadd.f32 0.0, %v447
        %449 = vmatmul.bf16.gmra.mxu0 %v333
        %v450 = vpop.f32.mrf.mxu0
        %v451 = vadd.f32 0.0, %v450
        %v452 = vpop.f32.mrf.mxu0
        %v453 = vadd.f32 0.0, %v452
        %454 = vmatmul.bf16.gmra.mxu0 %v334
        %v455 = vpop.f32.mrf.mxu0
        %v456 = vadd.f32 0.0, %v455
        %v457 = vpop.f32.mrf.mxu0
        %v458 = vadd.f32 0.0, %v457
        %459 = vmatmul.bf16.gmra.mxu0 %v335
        %v460 = vpop.f32.mrf.mxu0
        %v461 = vadd.f32 0.0, %v460
        %v462 = vpop.f32.mrf.mxu0
        %v463 = vadd.f32 0.0, %v462
        %464 = vmatmul.bf16.gmra.mxu0 %v336
        %v465 = vpop.f32.mrf.mxu0
        %v466 = vadd.f32 0.0, %v465
        %v467 = vpop.f32.mrf.mxu0
        %v468 = vadd.f32 0.0, %v467
        %469 = vmatmul.bf16.gmra.mxu0 %v337
        %v470 = vpop.f32.mrf.mxu0
        %v471 = vadd.f32 0.0, %v470
        %v472 = vpop.f32.mrf.mxu0
        %v473 = vadd.f32 0.0, %v472
        %474 = vmatmul.bf16.gmra.mxu0 %v338
        %v475 = vpop.f32.mrf.mxu0
        %v476 = vadd.f32 0.0, %v475
        %v477 = vpop.f32.mrf.mxu0
        %v478 = vadd.f32 0.0, %v477
        %479 = vmatmul.bf16.gmra.mxu0 %v339
        %v480 = vpop.f32.mrf.mxu0
        %v481 = vadd.f32 0.0, %v480
        %v482 = vpop.f32.mrf.mxu0
        %v483 = vadd.f32 0.0, %v482
        %484 = vmatmul.bf16.gmra.mxu0 %v340
        %v485 = vpop.f32.mrf.mxu0
        %v486 = vadd.f32 0.0, %v485
        %v487 = vpop.f32.mrf.mxu0
        %v488 = vadd.f32 0.0, %v487
        %489 = vmatmul.bf16.gmra.mxu0 %v341
        %v490 = vpop.f32.mrf.mxu0
        %v491 = vadd.f32 0.0, %v490
        %v492 = vpop.f32.mrf.mxu0
        %v493 = vadd.f32 0.0, %v492
        %494 = vdwg.mxu0
        %495 = vst [vmem:[%s204] sm:$0xff] %v416
        %496 = vst [vmem:[%s204 + $0x8] sm:$0xff] %v418
        %497 = vst [vmem:[%s204 + $0x10] sm:$0xff] %v421
        %498 = vst [vmem:[%s204 + $0x18] sm:$0xff] %v423
        %499 = vst [vmem:[%s204 + $0x20] sm:$0xff] %v426
        %500 = vst [vmem:[%s204 + $0x28] sm:$0xff] %v428
        %501 = vst [vmem:[%s204 + $0x30] sm:$0xff] %v431
        %502 = vst [vmem:[%s204 + $0x38] sm:$0xff] %v433
        %503 = vst [vmem:[%s204 + $0x40] sm:$0xff] %v436
        %504 = vst [vmem:[%s204 + $0x48] sm:$0xff] %v438
        %505 = vst [vmem:[%s204 + $0x50] sm:$0xff] %v441
        %506 = vst [vmem:[%s204 + $0x58] sm:$0xff] %v443
        %507 = vst [vmem:[%s204 + $0x60] sm:$0xff] %v446
        %508 = vst [vmem:[%s204 + $0x68] sm:$0xff] %v448
        %509 = vst [vmem:[%s204 + $0x70] sm:$0xff] %v451
        %510 = vst [vmem:[%s204 + $0x78] sm:$0xff] %v453
        %511 = vst [vmem:[%s204 + $0x80] sm:$0xff] %v456
        %512 = vst [vmem:[%s204 + $0x88] sm:$0xff] %v458
        %513 = vst [vmem:[%s204 + $0x90] sm:$0xff] %v461
        %514 = vst [vmem:[%s204 + $0x98] sm:$0xff] %v463
        %515 = vst [vmem:[%s204 + $0xa0] sm:$0xff] %v466
        %516 = vst [vmem:[%s204 + $0xa8] sm:$0xff] %v468
        %517 = vst [vmem:[%s204 + $0xb0] sm:$0xff] %v471
        %518 = vst [vmem:[%s204 + $0xb8] sm:$0xff] %v473
        %519 = vst [vmem:[%s204 + $0xc0] sm:$0xff] %v476
        %520 = vst [vmem:[%s204 + $0xc8] sm:$0xff] %v478
        %521 = vst [vmem:[%s204 + $0xd0] sm:$0xff] %v481
        %522 = vst [vmem:[%s204 + $0xd8] sm:$0xff] %v483
        %523 = vst [vmem:[%s204 + $0xe0] sm:$0xff] %v486
        %524 = vst [vmem:[%s204 + $0xe8] sm:$0xff] %v488
        %525 = vst [vmem:[%s204 + $0xf0] sm:$0xff] %v491
        %526 = vst [vmem:[%s204 + $0xf8] sm:$0xff] %v493
        %v527 = vld [vmem:[#allocation8] sm:$0x1]
        %v528 = vadd.f32 %v416, %v418
        %v529 = vadd.f32 %v528, %v421
        %v530 = vadd.f32 %v529, %v423
        %v531 = vadd.f32 %v530, %v426
        %v532 = vadd.f32 %v531, %v428
        %v533 = vadd.f32 %v532, %v431
        %v534 = vadd.f32 %v533, %v433
        %v535 = vadd.f32 %v534, %v436
        %v536 = vadd.f32 %v535, %v438
        %v537 = vadd.f32 %v536, %v441
        %v538 = vadd.f32 %v537, %v443
        %v539 = vadd.f32 %v538, %v446
        %v540 = vadd.f32 %v539, %v448
        %v541 = vadd.f32 %v540, %v451
        %v542 = vadd.f32 %v541, %v453
        %v543 = vadd.f32 %v542, %v456
        %v544 = vadd.f32 %v543, %v458
        %v545 = vadd.f32 %v544, %v461
        %v546 = vadd.f32 %v545, %v463
        %v547 = vadd.f32 %v546, %v466
        %v548 = vadd.f32 %v547, %v468
        %v549 = vadd.f32 %v548, %v471
        %v550 = vadd.f32 %v549, %v473
        %v551 = vadd.f32 %v550, %v476
        %v552 = vadd.f32 %v551, %v478
        %v553 = vadd.f32 %v552, %v481
        %v554 = vadd.f32 %v553, %v483
        %v555 = vadd.f32 %v554, %v486
        %v556 = vadd.f32 %v555, %v488
        %v557 = vadd.f32 %v556, %v491
        %v558 = vadd.f32 %v557, %v493
        %v559 = vrot.slane %v558, 4
        %v560 = vadd.f32 %v558, %v559
        %v561 = vrot.slane %v560, 2
        %v562 = vadd.f32 %v560, %v561
        %v563 = vrot.slane %v562, 1
        %v564 = vadd.f32 %v562, %v563
        %v565 = vadd.f32 %v527, %v564
        %566 = vst [vmem:[#allocation8] sm:$0x1] %v565
        %v567 = vld [vmem:[#allocation8 + $0x1] sm:$0x1]
        %v568 = vmul.f32 %v416, %v416
        %v569 = vmul.f32 %v418, %v418
        %v570 = vmul.f32 %v421, %v421
        %v571 = vmul.f32 %v423, %v423
        %v572 = vmul.f32 %v426, %v426
        %v573 = vmul.f32 %v428, %v428
        %v574 = vmul.f32 %v431, %v431
        %v575 = vmul.f32 %v433, %v433
        %v576 = vmul.f32 %v436, %v436
        %v577 = vmul.f32 %v438, %v438
        %v578 = vmul.f32 %v441, %v441
        %v579 = vmul.f32 %v443, %v443
        %v580 = vmul.f32 %v446, %v446
        %v581 = vmul.f32 %v448, %v448
        %v582 = vmul.f32 %v451, %v451
        %v583 = vmul.f32 %v453, %v453
        %v584 = vmul.f32 %v456, %v456
        %v585 = vmul.f32 %v458, %v458
        %v586 = vmul.f32 %v461, %v461
        %v587 = vmul.f32 %v463, %v463
        %v588 = vmul.f32 %v466, %v466
        %v589 = vmul.f32 %v468, %v468
        %v590 = vmul.f32 %v471, %v471
        %v591 = vmul.f32 %v473, %v473
        %v592 = vmul.f32 %v476, %v476
        %v593 = vmul.f32 %v478, %v478
        %v594 = vmul.f32 %v481, %v481
        %v595 = vmul.f32 %v483, %v483
        %v596 = vmul.f32 %v486, %v486
        %v597 = vmul.f32 %v488, %v488
        %v598 = vmul.f32 %v491, %v491
        %v599 = vmul.f32 %v493, %v493
        %v600 = vadd.f32 %v568, %v569
        %v601 = vadd.f32 %v600, %v570
        %v602 = vadd.f32 %v601, %v571
        %v603 = vadd.f32 %v602, %v572
        %v604 = vadd.f32 %v603, %v573
        %v605 = vadd.f32 %v604, %v574
        %v606 = vadd.f32 %v605, %v575
        %v607 = vadd.f32 %v606, %v576
        %v608 = vadd.f32 %v607, %v577
        %v609 = vadd.f32 %v608, %v578
        %v610 = vadd.f32 %v609, %v579
        %v611 = vadd.f32 %v610, %v580
        %v612 = vadd.f32 %v611, %v581
        %v613 = vadd.f32 %v612, %v582
        %v614 = vadd.f32 %v613, %v583
        %v615 = vadd.f32 %v614, %v584
        %v616 = vadd.f32 %v615, %v585
        %v617 = vadd.f32 %v616, %v586
        %v618 = vadd.f32 %v617, %v587
        %v619 = vadd.f32 %v618, %v588
        %v620 = vadd.f32 %v619, %v589
        %v621 = vadd.f32 %v620, %v590
        %v622 = vadd.f32 %v621, %v591
        %v623 = vadd.f32 %v622, %v592
        %v624 = vadd.f32 %v623, %v593
        %v625 = vadd.f32 %v624, %v594
        %v626 = vadd.f32 %v625, %v595
        %v627 = vadd.f32 %v626, %v596
        %v628 = vadd.f32 %v627, %v597
        %v629 = vadd.f32 %v628, %v598
        %v630 = vadd.f32 %v629, %v599
        %v631 = vrot.slane %v630, 4
        %v632 = vadd.f32 %v630, %v631
        %v633 = vrot.slane %v632, 2
        %v634 = vadd.f32 %v632, %v633
        %v635 = vrot.slane %v634, 1
        %v636 = vadd.f32 %v634, %v635
        %v637 = vadd.f32 %v567, %v636
        %638 = vst [vmem:[#allocation8 + $0x1] sm:$0x1] %v637
        %s639 = sand.u32 %s78, 1
        %s640 = scalar_lea.sflag [#allocation4], %s639
        %s641 = sand.u32 %s78, 1
        %s642 = smul.addr %s641, 256
        %s643 = scalar_lea.vmem [#allocation7], %s642
        // Predicated region
        $region41: #{tpu_custom_call.1} parent=27 // pred_check
          %p644 = pneg %p88
        $region42: #{tpu_custom_call.1} parent=27 // pred_check_branch
          %646 = sbr.rel (%p644) target = $region44
        $region43: #{tpu_custom_call.1} parent=27 // pred_region
          %s647 = smul.u32 32, %s23
          %649 = vsyncadd %s640, 0
          %s650 = smul.addr %s647, 8
          %s651 = scalar_lea.hbm %s2, %s650
          %s652 = sshll.u32 %s643, 4
          %s653 = int_to_ptr.vmem [resolvable:$true] %s652
          %s654 = sshll.u32 %s651, 4
          %s655 = int_to_ptr.hbm [resolvable:$true] %s654
          %660 = dma.vmem_to_hbm [thread:$0]  %s653, 4096, %s655, %s640, 128, 128, 8
        $region44: #{tpu_custom_call.1} parent=27 // pred_fallthru
          _
        // Predicated region
        $region45: #{tpu_custom_call.1} parent=27 // pred_check
          %p661 = pneg %p109
        $region46: #{tpu_custom_call.1} parent=27 // pred_check_branch
          %663 = sbr.rel (%p661) target = $region48
        $region47: #{tpu_custom_call.1} parent=27 // pred_region
          %665 = vsyncadd [#allocation9], 0
          %s667 = sshll.u32 [#allocation8], 4
          %s668 = int_to_ptr.vmem [resolvable:$true] %s667
          %s669 = sshll.u32 %s3, 4
          %s670 = int_to_ptr.hbm [resolvable:$true] %s669
          %672 = dma.vmem_to_hbm [thread:$0]  %s668, 128, %s670, [#allocation9]
        $region48: #{tpu_custom_call.1} parent=27 // pred_fallthru
          _
        // Predicated region
        $region49: #{tpu_custom_call.1} parent=27 // pred_check
          %p673 = pneg %p109
        $region50: #{tpu_custom_call.1} parent=27 // pred_check_branch
          %675 = sbr.rel (%p673) target = $region52
        $region51: #{tpu_custom_call.1} parent=27 // pred_region
          %677 = dma.done [#allocation9], 128
        $region52: #{tpu_custom_call.1} parent=27 // pred_fallthru
          _
      $region28: #{tpu_custom_call.1} parent=5 // pred_fallthru
        _
      %p678 = scmp.le.s32.totalorder 2, %s18
      // Predicated region
      $region53: #{tpu_custom_call.1} parent=5 // pred_check
        %p679 = pneg %p678
      $region54: #{tpu_custom_call.1} parent=5 // pred_check_branch
        %681 = sbr.rel (%p679) target = $region56
      $region55: #{tpu_custom_call.1} parent=5 // pred_region
        %s682 = ssub.s32 %s18, 2
        // Predicated region
        $region57: #{tpu_custom_call.1} parent=55 // pred_check
          %p683 = pneg %p94
        $region58: #{tpu_custom_call.1} parent=55 // pred_check_branch
          %685 = sbr.rel (%p683) target = $region60
        $region59: #{tpu_custom_call.1} parent=55 // pred_region
          %s686 = sand.u32 %s79, 1
          %s687 = scalar_lea.sflag [#allocation4], %s686
          %s688 = sand.u32 %s79, 1
          %s689 = smul.addr %s688, 256
          %s690 = scalar_lea.vmem [#allocation7], %s689
          %692 = dma.done %s687, 4096
        $region60: #{tpu_custom_call.1} parent=55 // pred_fallthru
          _
      $region56: #{tpu_custom_call.1} parent=5 // pred_fallthru
        _
    $region6: #{tpu_custom_call.1} parent=1 // loop_footer
      %s22 = sadd.s32 1, %s18
    $region7: #{tpu_custom_call.1} parent=1 // loop_footer_branch
      %17 = sbr.rel target = $region3
    $region8: #{tpu_custom_call.1} parent=1 // loop_exit
      _
    %693 = vsyncpa [#allocation3], 1
    %s694 = scalar_lea.sflag [#allocation3], 1
    %695 = vsyncpa %s694, 1
    %696 = vsyncpa [#allocation6], 1
    %697 = vsyncpa [#allocation4], 1
    %s698 = scalar_lea.sflag [#allocation4], 1
    %699 = vsyncpa %s698, 1
    %700 = vsyncpa [#allocation9], 1

</llo_original>
